<compile_context>
chip_gen: v6e
topology: v6e:2x2x1
jax: 0.10.0
libtpu: 0.0.40
codegen_flags: <defaults>
</compile_context>

<pallas_src>
import functools

import jax
import jax.numpy as jnp
from jax.experimental import pallas as pl
from jax.experimental.pallas import tpu as pltpu

LANE = 128          # TPU vreg lane width
NEG_INF = -1e30     # "masked" logit for padded action columns (finite -> no NaN paths)


def _linear_policy_kernel(x_ref, w_ref, b_ref, o_ref):
    # (TB, D_in) @ (D_in, N_pad) on the MXU, f32 accumulation; bias add on the VPU.
    logits = jnp.dot(x_ref[...], w_ref[...],
                     preferred_element_type=jnp.float32) + b_ref[...]
    # Numerically stable log_softmax along the (lane-dense, padded) last dim.
    # Padded columns carry NEG_INF bias -> they never win the max and exp()->0,
    # so the LSE over the padded row equals the LSE over the real D_out columns.
    m = jnp.max(logits, axis=-1, keepdims=True)
    shifted = logits - m
    lse = jnp.log(jnp.sum(jnp.exp(shifted), axis=-1, keepdims=True))
    o_ref[...] = (shifted - lse).astype(o_ref.dtype)


def prepare_linear_policy_params(weight, bias):
    """One-time prep of nn.Linear params for the kernel.

    weight: (D_out, D_in)  (PyTorch layout), bias: (D_out,)
    Returns w_pad: (D_in, N_pad) with zero-padded extra columns,
            b_pad: (1, N_pad) with NEG_INF in padded columns,
            d_out: the real number of actions.
    """
    d_out, d_in = weight.shape
    n_pad = pl.cdiv(d_out, LANE) * LANE  # round D_out up to a lane-dense width
    w_pad = jnp.zeros((d_in, n_pad), jnp.float32)
    w_pad = w_pad.at[:, :d_out].set(weight.T.astype(jnp.float32))
    b_pad = jnp.full((1, n_pad), NEG_INF, dtype=jnp.float32)
    b_pad = b_pad.at[0, :d_out].set(bias.astype(jnp.float32))
    return w_pad, b_pad, d_out


@functools.partial(jax.jit, static_argnames=("d_out", "tb"))
def linear_policy_forward(obs, w_pad, b_pad, *, d_out, tb=512):
    """obs: (B, D_in) f32; w_pad/b_pad from prepare_linear_policy_params.

    Returns logp: (B, d_out) f32 == log_softmax(obs @ W.T + b, axis=-1)
    """
    B, D_in = obs.shape
    n_pad = w_pad.shape[1]

    # Batch tile: whole batch if small, else a multiple of 8 rows (sublane aligned).
    if B <= tb:
        tb = B
    else:
        tb = max(8, (tb // 8) * 8)
    grid = (pl.cdiv(B, tb),)

    out_pad = pl.pallas_call(
        _linear_policy_kernel,
        out_shape=jax.ShapeDtypeStruct((B, n_pad), jnp.float32),
        grid_spec=pl.GridSpec(
            grid=grid,
            in_specs=[
                # obs tiled over the batch; feature dim kept whole (single-pass softmax).
                pl.BlockSpec((tb, D_in), lambda i: (i, 0)),
                # weight / bias: full arrays, resident across all grid steps.
                pl.BlockSpec((D_in, n_pad), lambda i: (0, 0)),
                pl.BlockSpec((1, n_pad), lambda i: (0, 0)),
            ],
            out_specs=pl.BlockSpec((tb, n_pad), lambda i: (i, 0)),
        ),
        compiler_params=pltpu.CompilerParams(
            dimension_semantics=("parallel",)),  # shards batch across TCs on v7x
    )(obs, w_pad, b_pad)

    # Drop the lane-padding columns outside the kernel.
    return out_pad[:, :d_out]


if __name__ == "__main__":
    # sizes = (D_in, D_out); LinearPolicy is a single nn.Linear, nA = 4 actions.
    D_in, D_out = 32, 4
    B = 8  # small batch of observations

    key = jax.random.PRNGKey(0)
    k_obs, k_w, k_b, k_big = jax.random.split(key, 4)

    obs = jax.random.normal(k_obs, (B, D_in), dtype=jnp.float32)
    # Deterministic "init" of nn.Linear(D_in, D_out): weight (D_out, D_in), bias (D_out,)
    weight = jax.random.normal(k_w, (D_out, D_in), dtype=jnp.float32) * 0.1
    bias = jax.random.normal(k_b, (D_out,), dtype=jnp.float32) * 0.1

    # One-time parameter prep (padding to a lane-dense action dim).
    w_pad, b_pad, d_out = prepare_linear_policy_params(weight, bias)

    # Small-shape check (single grid step).
    logp = linear_policy_forward(obs, w_pad, b_pad, d_out=d_out)
    jax.block_until_ready(logp)
    ref = jax.nn.log_softmax(obs @ weight.T + bias, axis=-1)
    assert logp.shape == (B, D_out)
    assert jnp.allclose(logp, ref, atol=1e-5, rtol=1e-5), "mismatch vs reference (small batch)"

    # Larger batch exercises the tiled / multi-step grid path.
    B_big = 1024
    obs_big = jax.random.normal(k_big, (B_big, D_in), dtype=jnp.float32)
    logp_big = linear_policy_forward(obs_big, w_pad, b_pad, d_out=d_out)
    jax.block_until_ready(logp_big)
    ref_big = jax.nn.log_softmax(obs_big @ weight.T + bias, axis=-1)
    assert logp_big.shape == (B_big, D_out)
    assert jnp.allclose(logp_big, ref_big, atol=1e-5, rtol=1e-5), "mismatch vs reference (big batch)"

    print("KERNEL_OK")
</pallas_src>

<mosaic_0001>
module attributes {stable_mosaic.version = 11 : i64} {
  func.func @_linear_policy_kernel(%arg0: i32, %arg1: memref<8x32xf32, #tpu.memory_space<vmem>>, %arg2: memref<32x128xf32, #tpu.memory_space<vmem>>, %arg3: memref<1x128xf32, #tpu.memory_space<vmem>>, %arg4: memref<8x128xf32, #tpu.memory_space<vmem>>) attributes {dimension_semantics = [#tpu.dimension_semantics<parallel>], iteration_bounds = array<i64: 1>, scalar_prefetch = 0 : i64, scratch_operands = 0 : i64, tpu.core_type = #tpu.core_type<tc>, window_params = [{transform_indices = @transform_0, window_bounds = array<i64: 8, 32>}, {pipeline_mode = #tpu.pipeline_mode<synchronous>, transform_indices = @transform_1, window_bounds = array<i64: 32, 128>}, {pipeline_mode = #tpu.pipeline_mode<synchronous>, transform_indices = @transform_2, window_bounds = array<i64: 1, 128>}, {transform_indices = @transform_3, window_bounds = array<i64: 8, 128>}]} {
    %c0 = arith.constant 0 : index
    %c0_0 = arith.constant 0 : index
    %0 = vector.load %arg1[%c0, %c0_0] : memref<8x32xf32, #tpu.memory_space<vmem>>, vector<8x32xf32>
    %c0_1 = arith.constant 0 : index
    %c0_2 = arith.constant 0 : index
    %1 = vector.load %arg2[%c0_1, %c0_2] : memref<32x128xf32, #tpu.memory_space<vmem>>, vector<32x128xf32>
    %cst = arith.constant dense<0.000000e+00> : vector<8x128xf32>
    %2 = tpu.matmul %0, %1, %cst {dimension_numbers = #tpu.dot_dimension_numbers<[1], [0], [0], [1], [0, 0, 1, 1], [], []>} : vector<8x32xf32>, vector<32x128xf32>, vector<8x128xf32> -> vector<8x128xf32>
    %c0_3 = arith.constant 0 : index
    %c0_4 = arith.constant 0 : index
    %3 = vector.load %arg3[%c0_3, %c0_4] : memref<1x128xf32, #tpu.memory_space<vmem>>, vector<1x128xf32>
    %4 = vector.broadcast %3 : vector<1x128xf32> to vector<8x128xf32>
    %5 = arith.addf %2, %4 : vector<8x128xf32>
    %cst_5 = arith.constant dense<0xFF800000> : vector<8xf32>
    %6 = vector.multi_reduction <maximumf>, %5, %cst_5 [1] : vector<8x128xf32> to vector<8xf32>
    %7 = vector.shape_cast %6 : vector<8xf32> to vector<8x1xf32>
    %8 = vector.broadcast %7 : vector<8x1xf32> to vector<8x128xf32>
    %9 = arith.subf %5, %8 : vector<8x128xf32>
    %10 = math.exp %9 : vector<8x128xf32>
    %cst_6 = arith.constant dense<0.000000e+00> : vector<8xf32>
    %11 = vector.multi_reduction <add>, %10, %cst_6 [1] : vector<8x128xf32> to vector<8xf32>
    %12 = vector.shape_cast %11 : vector<8xf32> to vector<8x1xf32>
    %13 = math.log %12 : vector<8x1xf32>
    %14 = vector.broadcast %13 : vector<8x1xf32> to vector<8x128xf32>
    %15 = arith.subf %9, %14 : vector<8x128xf32>
    %c0_7 = arith.constant 0 : index
    %c0_8 = arith.constant 0 : index
    %16 = vector.load %arg4[%c0_7, %c0_8] : memref<8x128xf32, #tpu.memory_space<vmem>>, vector<8x128xf32>
    tpu.vector_store %arg4[%c0_7, %c0_8], %15 {strides = array<i32>} : memref<8x128xf32, #tpu.memory_space<vmem>>, vector<8x128xf32>,
    return
  }
  func.func @transform_0(%arg0: i32) -> (i32, i32) {
    %c0_i32 = arith.constant 0 : i32
    %c0_i32_0 = arith.constant 0 : i32
    return %arg0, %c0_i32 : i32, i32
  }
  func.func @transform_1(%arg0: i32) -> (i32, i32) {
    %c0_i32 = arith.constant 0 : i32
    %c0_i32_0 = arith.constant 0 : i32
    %c0_i32_1 = arith.constant 0 : i32
    return %c0_i32, %c0_i32_0 : i32, i32
  }
  func.func @transform_2(%arg0: i32) -> (i32, i32) {
    %c0_i32 = arith.constant 0 : i32
    %c0_i32_0 = arith.constant 0 : i32
    %c0_i32_1 = arith.constant 0 : i32
    return %c0_i32, %c0_i32_0 : i32, i32
  }
  func.func @transform_3(%arg0: i32) -> (i32, i32) {
    %c0_i32 = arith.constant 0 : i32
    %c0_i32_0 = arith.constant 0 : i32
    return %arg0, %c0_i32 : i32, i32
  }
}

</mosaic_0001>

<llo_original>
// kernel: linear_policy_forward.1
$region0: #{linear_policy_forward.1}
  #allocation0 [shape = 'u32[]', space=smem, size = 0x4, offset = 0x4, fixed_abs, tag = 'smem constant byte address 0x4 - core index']
  #allocation1 [shape = 'u32[144,128]{1,0:T(1,128)}', space=vmem, size = 0x12000, scoped, tag = 'internal scratch']
  %s0 = inlined_call_operand.hbm [shape: f32[8,32], index: 0, kind: input, shape index: {}]
  %s1 = inlined_call_operand.hbm [shape: f32[32,128], index: 1, kind: input, shape index: {}]
  %s2 = inlined_call_operand.vmem [shape: f32[1,128], index: 2, kind: input, shape index: {}]
  %s3 = inlined_call_operand.vmem [shape: f32[8,128], index: 3, kind: output, shape index: {}]
  %s4 = sld [smem:[#allocation0]]
  $region30: #{linear_policy_forward.1} parent=0
    _
  %s6 = ssub.s32 1, %s4
  %s7 = scalar_select 0, %s6, %s4
  $region1: #{linear_policy_forward.1} parent=0
    #allocation2 [shape = 'u8[4096]{0}', space=vmem, size = 0x1000, scoped, tag = 'input window, operand 0, single buffered']
    #allocation3 [shape = 's32[1]{0}', space=sflag, size = 0x4, scoped, tag = 'scoped memory for linear_policy_forward.1']
    #allocation4 [shape = 'u8[16384]{0}', space=vmem, size = 0x4000, scoped, tag = 'input window, operand 1, single buffered']
    #allocation5 [shape = 's32[1]{0}', space=sflag, size = 0x4, scoped, tag = 'scoped memory for linear_policy_forward.1']
    %8 = vsyncpa [#allocation3], 0
    %9 = vsyncpa [#allocation5], 0
    // Predicated region
    $region2: #{linear_policy_forward.1} parent=1 // pred_check
      _
    $region3: #{linear_policy_forward.1} parent=1 // pred_check_branch
      %11 = sbr.rel (0) target = $region5
    $region4: #{linear_policy_forward.1} parent=1 // pred_region
      %s13 = ssub.s32 128, 128
      %14 = vsyncadd [#allocation3], %s13
      %s16 = sshll.u32 [#allocation2], 4
      %s17 = int_to_ptr.vmem [resolvable:$true] %s16
      %19 = dma.hbm_to_vmem [thread:$0]  %s0, 128, %s17, [#allocation3]
    $region5: #{linear_policy_forward.1} parent=1 // pred_fallthru
      _
    // Predicated region
    $region6: #{linear_policy_forward.1} parent=1 // pred_check
      _
    $region7: #{linear_policy_forward.1} parent=1 // pred_check_branch
      %21 = sbr.rel (0) target = $region9
    $region8: #{linear_policy_forward.1} parent=1 // pred_region
      %s23 = ssub.s32 512, 512
      %24 = vsyncadd [#allocation5], %s23
      %s25 = sshll.u32 [#allocation4], 4
      %s26 = int_to_ptr.vmem [resolvable:$true] %s25
      %31 = dma.hbm_to_vmem [thread:$0]  %s1, 512, %s26, [#allocation5], 128, 128, 8
    $region9: #{linear_policy_forward.1} parent=1 // pred_fallthru
      _
    // Predicated region
    $region10: #{linear_policy_forward.1} parent=1 // pred_check
      _
    $region11: #{linear_policy_forward.1} parent=1 // pred_check_branch
      %33 = sbr.rel (0) target = $region13
    $region12: #{linear_policy_forward.1} parent=1 // pred_region
      _
    $region13: #{linear_policy_forward.1} parent=1 // pred_fallthru
      _
    // Predicated region
    $region14: #{linear_policy_forward.1} parent=1 // pred_check
      _
    $region15: #{linear_policy_forward.1} parent=1 // pred_check_branch
      %35 = sbr.rel (0) target = $region17
    $region16: #{linear_policy_forward.1} parent=1 // pred_region
      %36 = dma.done [#allocation3], 128
    $region17: #{linear_policy_forward.1} parent=1 // pred_fallthru
      _
    // Predicated region
    $region18: #{linear_policy_forward.1} parent=1 // pred_check
      _
    $region19: #{linear_policy_forward.1} parent=1 // pred_check_branch
      %38 = sbr.rel (0) target = $region21
    $region20: #{linear_policy_forward.1} parent=1 // pred_region
      %39 = dma.done [#allocation5], 512
    $region21: #{linear_policy_forward.1} parent=1 // pred_fallthru
      _
    %v40 = vld [vmem:[#allocation2] sm:$0xff]
    %v41 = vld [vmem:[#allocation4] sm:$0xff]
    %v42 = vld [vmem:[#allocation4 + $0x8] sm:$0xff]
    %v43 = vld [vmem:[#allocation4 + $0x10] sm:$0xff]
    %v44 = vld [vmem:[#allocation4 + $0x18] sm:$0xff]
    %v45 = vld [vmem:[%s2] sm:$0x1]
    %v47 = vlaneseq
    %v48 = vshrl.u32 %v47, 7
    %v49 = vsub.s32 0, %v48
    %v50 = vrot.slane %v45, %v49
    %vm52 = vcmask 261120
    %v54 = vsel %vm52, %v40, 0
    %56 = vmatprep.subr.mxu0 0.0
    %57 = vmatpush1.msra.mxu0 0.0
    %58 = vmatprep.subr.mxu0 0.0
    %59 = vmatpush1.msra.mxu0 0.0
    %60 = vmatprep.subr.mxu0 0.0
    %61 = vmatpush1.msra.mxu0 0.0
    %62 = vmatprep.subr.mxu0 0.0
    %63 = vmatpush1.msra.mxu0 0.0
    %64 = vmatprep.subr.mxu0 0.0
    %65 = vmatpush1.msra.mxu0 0.0
    %66 = vmatprep.subr.mxu0 0.0
    %67 = vmatpush1.msra.mxu0 0.0
    %68 = vmatprep.subr.mxu0 0.0
    %69 = vmatpush1.msra.mxu0 0.0
    %70 = vmatprep.subr.mxu0 0.0
    %71 = vmatpush1.msra.mxu0 0.0
    %72 = vmatprep.subr.mxu0 0.0
    %73 = vmatpush1.msra.mxu0 0.0
    %74 = vmatprep.subr.mxu0 0.0
    %75 = vmatpush1.msra.mxu0 0.0
    %76 = vmatprep.subr.mxu0 0.0
    %77 = vmatpush1.msra.mxu0 0.0
    %78 = vmatprep.subr.mxu0 0.0
    %79 = vmatpush1.msra.mxu0 0.0
    %80 = vmatprep.subr.mxu0 0.0
    %81 = vmatpush1.msra.mxu0 %v44
    %82 = vmatprep.subr.mxu0 0.0
    %83 = vmatpush1.msra.mxu0 %v43
    %84 = vmatprep.subr.mxu0 0.0
    %85 = vmatpush1.msra.mxu0 %v42
    %86 = vmatprep.subr.mxu0 0.0
    %87 = vmatpush1.msra.mxu0 %v41
    %88 = vmatprep.subr.mxu0 0.0
    %89 = vmatpush2.msra.mxu0 0.0
    %90 = vmatprep.subr.mxu0 0.0
    %91 = vmatpush2.msra.mxu0 0.0
    %92 = vmatprep.subr.mxu0 0.0
    %93 = vmatpush2.msra.mxu0 0.0
    %94 = vmatprep.subr.mxu0 0.0
    %95 = vmatpush2.msra.mxu0 0.0
    %96 = vmatprep.subr.mxu0 0.0
    %97 = vmatpush2.msra.mxu0 0.0
    %98 = vmatprep.subr.mxu0 0.0
    %99 = vmatpush2.msra.mxu0 0.0
    %100 = vmatprep.subr.mxu0 0.0
    %101 = vmatpush2.msra.mxu0 0.0
    %102 = vmatprep.subr.mxu0 0.0
    %103 = vmatpush2.msra.mxu0 0.0
    %104 = vmatprep.subr.mxu0 0.0
    %105 = vmatpush2.msra.mxu0 0.0
    %106 = vmatprep.subr.mxu0 0.0
    %107 = vmatpush2.msra.mxu0 0.0
    %108 = vmatprep.subr.mxu0 0.0
    %109 = vmatpush2.msra.mxu0 0.0
    %110 = vmatprep.subr.mxu0 0.0
    %111 = vmatpush2.msra.mxu0 0.0
    %112 = vmatprep.subr.mxu0 0.0
    %113 = vmatpush2.msra.mxu0 0.0
    %114 = vmatprep.subr.mxu0 0.0
    %115 = vmatpush2.msra.mxu0 0.0
    %116 = vmatprep.subr.mxu0 0.0
    %117 = vmatpush2.msra.mxu0 0.0
    %118 = vmatprep.subr.mxu0 0.0
    %119 = vmatpush2.msra.mxu0 0.0
    %120 = vmatprep.mubr.f32.mxu0 0.0
    %121 = vmatmul.mubr.f32.gmra.mxu0 %v54
    %v122 = vpop.f32.mrf.mxu0
    %v123 = vadd.f32 %v50, %v122
    %v124 = vpop.f32.mrf.mxu0
    %125 = vdwg.mxu0
    %126 = vmax.xlane.f32.xlu0 %v123
    %v127 = vpop.xlane.xlu0 %126
    %v128 = vsub.f32 %v123, %v127
    %v129 = vmul.f32 %v128, 1.442695
    %v130 = vpow.pop %v129
    %131 = vadd.xlane.f32.xlu0 %v130
    %v132 = vpop.xlane.xlu0 %131
    %v133 = vlog2.pop %v132
    %v134 = vmul.f32 %v133, 0.6931472
    %v135 = vsub.f32 %v128, %v134
    %136 = vst [vmem:[%s3] sm:$0xff] %v135
    // Predicated region
    $region22: #{linear_policy_forward.1} parent=1 // pred_check
      _
    $region23: #{linear_policy_forward.1} parent=1 // pred_check_branch
      %138 = sbr.rel (0) target = $region25
    $region24: #{linear_policy_forward.1} parent=1 // pred_region
      _
    $region25: #{linear_policy_forward.1} parent=1 // pred_fallthru
      _
    // Predicated region
    $region26: #{linear_policy_forward.1} parent=1 // pred_check
      _
    $region27: #{linear_policy_forward.1} parent=1 // pred_check_branch
      %140 = sbr.rel (0) target = $region29
    $region28: #{linear_policy_forward.1} parent=1 // pred_region
      _
    $region29: #{linear_policy_forward.1} parent=1 // pred_fallthru
      _
    %141 = vsyncpa [#allocation3], 1
    %142 = vsyncpa [#allocation5], 1

</llo_original>
